<compile_context>
chip_gen: v7x
topology: tpu7x:2x2x1
jax: 0.10.0
libtpu: 0.0.40
codegen_flags: <defaults>
</compile_context>

<pallas_src>
import functools
import math

import jax
import jax.numpy as jnp
from jax.experimental import pallas as pl
from jax.experimental.pallas import tpu as pltpu

LANE = 128   # TPU lane width
SUB = 16     # sublane alignment safe for both bf16 (16,128) and f32 (8,128) tiles


def _round_up(x, m):
    return (x + m - 1) // m * m


def _sigmoid(x):
    # tanh form: one EUP transcendental push + two cheap VPU ops
    # (vs. exp + reciprocal = two EUP pushes per element).
    return 0.5 * (jnp.tanh(0.5 * x) + 1.0)


def mlp_kernel(x_ref, w_ref, b_ref, o_ref):
    # x_ref: (TB, D_in)        f32   batch tile
    # w_ref: (2, 128, 128)     bf16  [0]=w0 zero-padded, [1]=w1 zero-padded (resident)
    # b_ref: (2, 128)          f32   [0]=b0 padded,      [1]=b1 padded      (resident)
    # o_ref: (TB, 128)         bf16  lane-dense output block
    d_in = x_ref.shape[1]
    x = x_ref[...].astype(w_ref.dtype)           # in-kernel bf16 cast
    w0 = w_ref[0, :d_in, :]                      # (D_in, 128)
    w1 = w_ref[1]                                # (128, 128)
    b0 = b_ref[0:1, :]                           # (1, 128)
    b1 = b_ref[1:2, :]

    h = jnp.dot(x, w0, preferred_element_type=jnp.float32) + b0
    h = _sigmoid(h)                              # (TB, 128) f32
    # Padded lanes of h are sigmoid(0)=0.5, but the matching rows of w1 are
    # zero, so they contribute nothing to the second matmul.
    o = jnp.dot(h.astype(w1.dtype), w1, preferred_element_type=jnp.float32) + b1
    o_ref[...] = _sigmoid(o).astype(o_ref.dtype)


def pack_params(w0, b0, w1, b1, compute_dtype=jnp.bfloat16):
    """Build lane-dense weight/bias slabs ONCE at parameter-init time.

    The zero padding must stay exactly zero: it is what makes the padded-lane
    math in the kernel exact (see kernel comment)."""
    d_in, h0 = w0.shape
    h0_, h1 = w1.shape
    assert h0_ == h0 and d_in <= LANE and h0 <= LANE and h1 <= LANE
    w_slab = jnp.zeros((2, LANE, LANE), dtype=compute_dtype)
    w_slab = w_slab.at[0, :d_in, :h0].set(w0.astype(compute_dtype))
    w_slab = w_slab.at[1, :h0, :h1].set(w1.astype(compute_dtype))
    b_slab = jnp.zeros((2, LANE), dtype=jnp.float32)
    b_slab = b_slab.at[0, :h0].set(b0.astype(jnp.float32))
    b_slab = b_slab.at[1, :h1].set(b1.astype(jnp.float32))
    return w_slab, b_slab, h1


@functools.partial(jax.jit, static_argnames=("h1", "block_b"))
def nn_pt_3_forward(x, w_slab, b_slab, *, h1, block_b=1024):
    """out = sigmoid(sigmoid(x @ w0 + b0) @ w1 + b1);  x: (B, D_in) float32."""
    B, d_in = x.shape

    # Batch tiling: sublane-aligned, large tiles (per-grid-step overhead is
    # ~0.35 us and even a 2048x128 double-buffered tile is far under VMEM).
    b_al = _round_up(B, SUB)
    tb = min(_round_up(block_b, SUB), b_al)
    # v7x megacore: keep >= 2 grid steps on the "parallel" batch axis once the
    # batch is big enough that each half-tile still has >= 256 rows.
    if tb == b_al and b_al >= 512:
        tb = _round_up(pl.cdiv(b_al, 2), SUB)
    b_pad = _round_up(B, tb)
    grid_b = b_pad // tb

    x_p = x if b_pad == B else jnp.pad(x, ((0, b_pad - B), (0, 0)))

    out = pl.pallas_call(
        mlp_kernel,
        out_shape=jax.ShapeDtypeStruct((b_pad, LANE), jnp.bfloat16),
        grid_spec=pl.GridSpec(
            grid=(grid_b,),
            in_specs=[
                pl.BlockSpec((tb, d_in), lambda i: (i, 0)),          # x tile
                pl.BlockSpec((2, LANE, LANE), lambda i: (0, 0, 0)),  # weights (resident)
                pl.BlockSpec((2, LANE), lambda i: (0, 0)),           # biases (resident)
            ],
            out_specs=pl.BlockSpec((tb, LANE), lambda i: (i, 0)),
        ),
        compiler_params=pltpu.CompilerParams(
            dimension_semantics=("parallel",),
        ),
    )(x_p, w_slab, b_slab)

    # Slice to the real (B, H1) and restore f32; fuses with the pad under jit.
    return out[:B, :h1].astype(jnp.float32)


def init_linear_params(key, in_features, out_features):
    # Deterministic init mimicking torch.nn.Linear defaults
    # (uniform +-1/sqrt(fan_in) for both weight and bias).
    kw, kb = jax.random.split(key)
    bound = 1.0 / math.sqrt(in_features)
    # stored as (in, out) so the kernel computes x @ W
    w = jax.random.uniform(kw, (in_features, out_features),
                           minval=-bound, maxval=bound, dtype=jnp.float32)
    b = jax.random.uniform(kb, (out_features,),
                           minval=-bound, maxval=bound, dtype=jnp.float32)
    return w, b


if __name__ == "__main__":
    key = jax.random.PRNGKey(0)
    k_x, k_l0, k_l1 = jax.random.split(key, 3)

    batch = 2
    input_dim = 32
    hidden_dim_0 = 50
    hidden_dim_1 = 10

    x = jax.random.normal(k_x, (batch, input_dim), dtype=jnp.float32)
    w0, b0 = init_linear_params(k_l0, input_dim, hidden_dim_0)
    w1, b1 = init_linear_params(k_l1, hidden_dim_0, hidden_dim_1)

    # Pack once at init (hoisted out of the per-call forward).
    w_slab, b_slab, h1 = pack_params(w0, b0, w1, b1)

    def ref_forward(xx):
        return jax.nn.sigmoid(jax.nn.sigmoid(xx @ w0 + b0) @ w1 + b1)

    # Small case (single tile, padded batch).
    out = jax.block_until_ready(
        nn_pt_3_forward(x, w_slab, b_slab, h1=h1))
    assert out.shape == (batch, hidden_dim_1)
    assert jnp.allclose(out, ref_forward(x), atol=2e-2, rtol=2e-2)

    # Larger batch: exercises batch tiling (grid >= 2) and row padding.
    xb = jax.random.normal(k_x, (600, input_dim), dtype=jnp.float32)
    outb = jax.block_until_ready(
        nn_pt_3_forward(xb, w_slab, b_slab, h1=h1))
    assert outb.shape == (600, hidden_dim_1)
    assert jnp.allclose(outb, ref_forward(xb), atol=2e-2, rtol=2e-2)

    # TODO(synk): PW=True branch (python-level torch.cat of x[0] and x[1] plus
    # linear2) is not part of the PW=False forward implemented here.

    print("KERNEL_OK")
</pallas_src>

<mosaic_0001>
module attributes {stable_mosaic.version = 11 : i64} {
  func.func @mlp_kernel(%arg0: i32, %arg1: memref<16x32xf32, #tpu.memory_space<vmem>>, %arg2: memref<2x128x128xbf16, #tpu.memory_space<vmem>>, %arg3: memref<2x128xf32, #tpu.memory_space<vmem>>, %arg4: memref<16x128xbf16, #tpu.memory_space<vmem>>) attributes {dimension_semantics = [#tpu.dimension_semantics<parallel>], iteration_bounds = array<i64: 1>, scalar_prefetch = 0 : i64, scratch_operands = 0 : i64, tpu.core_type = #tpu.core_type<tc>, window_params = [{transform_indices = @transform_0, window_bounds = array<i64: 16, 32>}, {pipeline_mode = #tpu.pipeline_mode<synchronous>, transform_indices = @transform_1, window_bounds = array<i64: 2, 128, 128>}, {pipeline_mode = #tpu.pipeline_mode<synchronous>, transform_indices = @transform_2, window_bounds = array<i64: 2, 128>}, {transform_indices = @transform_3, window_bounds = array<i64: 16, 128>}]} {
    %c0 = arith.constant 0 : index
    %c0_0 = arith.constant 0 : index
    %0 = vector.load %arg1[%c0, %c0_0] : memref<16x32xf32, #tpu.memory_space<vmem>>, vector<16x32xf32>
    %1 = arith.truncf %0 : vector<16x32xf32> to vector<16x32xbf16>
    %c0_1 = arith.constant 0 : index
    %c0_2 = arith.constant 0 : index
    %c0_3 = arith.constant 0 : index
    %2 = vector.load %arg2[%c0_1, %c0_2, %c0_3] : memref<2x128x128xbf16, #tpu.memory_space<vmem>>, vector<1x32x128xbf16>
    %3 = vector.shape_cast %2 : vector<1x32x128xbf16> to vector<32x128xbf16>
    %c1 = arith.constant 1 : index
    %c0_4 = arith.constant 0 : index
    %c0_5 = arith.constant 0 : index
    %4 = vector.load %arg2[%c1, %c0_4, %c0_5] : memref<2x128x128xbf16, #tpu.memory_space<vmem>>, vector<1x128x128xbf16>
    %5 = vector.shape_cast %4 : vector<1x128x128xbf16> to vector<128x128xbf16>
    %c0_6 = arith.constant 0 : index
    %c0_7 = arith.constant 0 : index
    %6 = vector.load %arg3[%c0_6, %c0_7] : memref<2x128xf32, #tpu.memory_space<vmem>>, vector<1x128xf32>
    %c1_8 = arith.constant 1 : index
    %c0_9 = arith.constant 0 : index
    %7 = vector.load %arg3[%c1_8, %c0_9] : memref<2x128xf32, #tpu.memory_space<vmem>>, vector<1x128xf32>
    %cst = arith.constant dense<0.000000e+00> : vector<16x128xf32>
    %8 = tpu.matmul %1, %3, %cst {dimension_numbers = #tpu.dot_dimension_numbers<[1], [0], [0], [1], [0, 0, 1, 1], [], []>} : vector<16x32xbf16>, vector<32x128xbf16>, vector<16x128xf32> -> vector<16x128xf32>
    %9 = vector.broadcast %6 : vector<1x128xf32> to vector<16x128xf32>
    %10 = arith.addf %8, %9 : vector<16x128xf32>
    %cst_10 = arith.constant 5.000000e-01 : f32
    %11 = vector.broadcast %cst_10 : f32 to vector<16x128xf32>
    %12 = arith.mulf %11, %10 : vector<16x128xf32>
    %13 = math.tanh %12 : vector<16x128xf32>
    %cst_11 = arith.constant 1.000000e+00 : f32
    %14 = vector.broadcast %cst_11 : f32 to vector<16x128xf32>
    %15 = arith.addf %13, %14 : vector<16x128xf32>
    %cst_12 = arith.constant 5.000000e-01 : f32
    %16 = vector.broadcast %cst_12 : f32 to vector<16x128xf32>
    %17 = arith.mulf %16, %15 : vector<16x128xf32>
    %18 = arith.truncf %17 : vector<16x128xf32> to vector<16x128xbf16>
    %cst_13 = arith.constant dense<0.000000e+00> : vector<16x128xf32>
    %19 = tpu.matmul %18, %5, %cst_13 {dimension_numbers = #tpu.dot_dimension_numbers<[1], [0], [0], [1], [0, 0, 1, 1], [], []>} : vector<16x128xbf16>, vector<128x128xbf16>, vector<16x128xf32> -> vector<16x128xf32>
    %20 = vector.broadcast %7 : vector<1x128xf32> to vector<16x128xf32>
    %21 = arith.addf %19, %20 : vector<16x128xf32>
    %cst_14 = arith.constant 5.000000e-01 : f32
    %22 = vector.broadcast %cst_14 : f32 to vector<16x128xf32>
    %23 = arith.mulf %22, %21 : vector<16x128xf32>
    %24 = math.tanh %23 : vector<16x128xf32>
    %cst_15 = arith.constant 1.000000e+00 : f32
    %25 = vector.broadcast %cst_15 : f32 to vector<16x128xf32>
    %26 = arith.addf %24, %25 : vector<16x128xf32>
    %cst_16 = arith.constant 5.000000e-01 : f32
    %27 = vector.broadcast %cst_16 : f32 to vector<16x128xf32>
    %28 = arith.mulf %27, %26 : vector<16x128xf32>
    %29 = arith.truncf %28 : vector<16x128xf32> to vector<16x128xbf16>
    %c0_17 = arith.constant 0 : index
    %c0_18 = arith.constant 0 : index
    %30 = vector.load %arg4[%c0_17, %c0_18] : memref<16x128xbf16, #tpu.memory_space<vmem>>, vector<16x128xbf16>
    tpu.vector_store %arg4[%c0_17, %c0_18], %29 {strides = array<i32>} : memref<16x128xbf16, #tpu.memory_space<vmem>>, vector<16x128xbf16>,
    return
  }
  func.func @transform_0(%arg0: i32) -> (i32, i32) {
    %c0_i32 = arith.constant 0 : i32
    %c0_i32_0 = arith.constant 0 : i32
    return %arg0, %c0_i32 : i32, i32
  }
  func.func @transform_1(%arg0: i32) -> (i32, i32, i32) {
    %c0_i32 = arith.constant 0 : i32
    %c0_i32_0 = arith.constant 0 : i32
    %c0_i32_1 = arith.constant 0 : i32
    %c0_i32_2 = arith.constant 0 : i32
    return %c0_i32, %c0_i32_0, %c0_i32_1 : i32, i32, i32
  }
  func.func @transform_2(%arg0: i32) -> (i32, i32) {
    %c0_i32 = arith.constant 0 : i32
    %c0_i32_0 = arith.constant 0 : i32
    %c0_i32_1 = arith.constant 0 : i32
    return %c0_i32, %c0_i32_0 : i32, i32
  }
  func.func @transform_3(%arg0: i32) -> (i32, i32) {
    %c0_i32 = arith.constant 0 : i32
    %c0_i32_0 = arith.constant 0 : i32
    return %arg0, %c0_i32 : i32, i32
  }
}

</mosaic_0001>

<llo_original>
// kernel: nn_pt_3_forward.1
$region0: #{nn_pt_3_forward.1}
  #allocation0 [shape = 'u32[]', space=smem, size = 0x4, offset = 0x4, fixed_abs, tag = 'smem constant byte address 0x4 - core index']
  #allocation1 [shape = 'u32[144,128]{1,0:T(1,128)}', space=vmem, size = 0x12000, scoped, tag = 'internal scratch']
  %s0 = inlined_call_operand.vmem [shape: f32[16,32], index: 0, kind: input, shape index: {}]
  %s1 = inlined_call_operand.hbm [shape: bf16[2,128,128], index: 1, kind: input, shape index: {}]
  %s2 = inlined_call_operand.vmem [shape: f32[2,128], index: 2, kind: input, shape index: {}]
  %s3 = inlined_call_operand.vmem [shape: bf16[16,128], index: 3, kind: output, shape index: {}]
  %s4 = sld [smem:[#allocation0]]
  $region26: #{nn_pt_3_forward.1} parent=0
    _
  %s6 = ssub.s32 1, %s4
  %s7 = scalar_select 0, %s6, %s4
  $region1: #{nn_pt_3_forward.1} parent=0
    #allocation2 [shape = 'u8[65536]{0}', space=vmem, size = 0x10000, scoped, tag = 'input window, operand 1, single buffered']
    #allocation3 [shape = 's32[1]{0}', space=sflag, size = 0x4, scoped, tag = 'scoped memory for nn_pt_3_forward.1']
    %8 = vsyncpa [#allocation3], 0
    // Predicated region
    $region2: #{nn_pt_3_forward.1} parent=1 // pred_check
      _
    $region3: #{nn_pt_3_forward.1} parent=1 // pred_check_branch
      %10 = sbr.rel (0) target = $region5
    $region4: #{nn_pt_3_forward.1} parent=1 // pred_region
      _
    $region5: #{nn_pt_3_forward.1} parent=1 // pred_fallthru
      _
    // Predicated region
    $region6: #{nn_pt_3_forward.1} parent=1 // pred_check
      _
    $region7: #{nn_pt_3_forward.1} parent=1 // pred_check_branch
      %12 = sbr.rel (0) target = $region9
    $region8: #{nn_pt_3_forward.1} parent=1 // pred_region
      %s14 = ssub.s32 2048, 2048
      %15 = vsyncadd [#allocation3], %s14
      %s16 = sshll.u32 [#allocation2], 4
      %s17 = int_to_ptr.vmem [resolvable:$true] %s16
      %22 = dma.hbm_to_vmem [thread:$0]  %s1, 2048, %s17, [#allocation3], 64, 64, 4
    $region9: #{nn_pt_3_forward.1} parent=1 // pred_fallthru
      _
    // Predicated region
    $region10: #{nn_pt_3_forward.1} parent=1 // pred_check
      _
    $region11: #{nn_pt_3_forward.1} parent=1 // pred_check_branch
      %24 = sbr.rel (0) target = $region13
    $region12: #{nn_pt_3_forward.1} parent=1 // pred_region
      _
    $region13: #{nn_pt_3_forward.1} parent=1 // pred_fallthru
      _
    // Predicated region
    $region14: #{nn_pt_3_forward.1} parent=1 // pred_check
      _
    $region15: #{nn_pt_3_forward.1} parent=1 // pred_check_branch
      %26 = sbr.rel (0) target = $region17
    $region16: #{nn_pt_3_forward.1} parent=1 // pred_region
      %27 = dma.done [#allocation3], 2048
    $region17: #{nn_pt_3_forward.1} parent=1 // pred_fallthru
      _
    %v29 = vld [vmem:[%s0] sm:$0xff]
    %v30 = vld [vmem:[%s0 + $0x8] sm:$0xff]
    %v31 = vpack.c.bf16 %v30, %v29
    %v32 = vld [vmem:[#allocation2] sm:$0xf]
    %v33 = vld [vmem:[#allocation2 + $0x4] sm:$0xf]
    %v34 = vld [vmem:[#allocation2 + $0x8] sm:$0xf]
    %v35 = vld [vmem:[#allocation2 + $0xc] sm:$0xf]
    %s36 = scalar_lea.vmem [#allocation2], 64
    %v37 = vld [vmem:[%s36] sm:$0xf]
    %v38 = vld [vmem:[%s36 + $0x4] sm:$0xf]
    %v39 = vld [vmem:[%s36 + $0x8] sm:$0xf]
    %v40 = vld [vmem:[%s36 + $0xc] sm:$0xf]
    %v41 = vld [vmem:[%s36 + $0x10] sm:$0xf]
    %v42 = vld [vmem:[%s36 + $0x14] sm:$0xf]
    %v43 = vld [vmem:[%s36 + $0x18] sm:$0xf]
    %v44 = vld [vmem:[%s36 + $0x1c] sm:$0xf]
    %v45 = vld [vmem:[%s36 + $0x20] sm:$0xf]
    %v46 = vld [vmem:[%s36 + $0x24] sm:$0xf]
    %v47 = vld [vmem:[%s36 + $0x28] sm:$0xf]
    %v48 = vld [vmem:[%s36 + $0x2c] sm:$0xf]
    %v49 = vld [vmem:[%s36 + $0x30] sm:$0xf]
    %v50 = vld [vmem:[%s36 + $0x34] sm:$0xf]
    %v51 = vld [vmem:[%s36 + $0x38] sm:$0xf]
    %v52 = vld [vmem:[%s36 + $0x3c] sm:$0xf]
    %v53 = vld [vmem:[%s2] sm:$0x1]
    %v54 = vld [vmem:[%s2 + $0x1] sm:$0x1]
    %v55 = vlaneseq
    %v56 = vshrl.u32 %v55, 7
    %v57 = vsub.s32 0, %v56
    %v58 = vrot.slane %v53, %v57
    %v63 = vunpack.c.l.b16 %v32
    %v64 = vunpack.c.l.b16 %v33
    %v65 = vunpack.c.l.b16 %v34
    %v66 = vunpack.c.l.b16 %v35
    %v67 = vpack.c.b16 %v64, %v63
    %v68 = vpack.c.b16 %v66, %v65
    %vm71 = vcmask 261120
    %v73 = vsel %vm71, %v31, 0
    %75 = vmatprep.subr.bf16.mxu0 0
    %76 = vmatpush1.bf16.msra.mxu0 %v67
    %77 = vmatprep.subr.bf16.mxu0 0
    %78 = vmatpush1.bf16.msra.mxu0 %v68
    %79 = vmatprep.subr.bf16.mxu0 0
    %80 = vmatpush1.bf16.msra.mxu0 0
    %81 = vmatprep.subr.bf16.mxu0 0
    %82 = vmatpush1.bf16.msra.mxu0 0
    %83 = vmatprep.subr.bf16.mxu0 0
    %84 = vmatpush1.bf16.msra.mxu0 0
    %85 = vmatprep.subr.bf16.mxu0 0
    %86 = vmatpush1.bf16.msra.mxu0 0
    %87 = vmatprep.subr.bf16.mxu0 0
    %88 = vmatpush1.bf16.msra.mxu0 0
    %89 = vmatprep.subr.bf16.mxu0 0
    %90 = vmatpush1.bf16.msra.mxu0 0
    %91 = vmatprep.subr.bf16.mxu0 0
    %92 = vmatpush1.bf16.msra.mxu0 0
    %93 = vmatprep.subr.bf16.mxu0 0
    %94 = vmatpush1.bf16.msra.mxu0 0
    %95 = vmatprep.subr.bf16.mxu0 0
    %96 = vmatpush1.bf16.msra.mxu0 0
    %97 = vmatprep.subr.bf16.mxu0 0
    %98 = vmatpush1.bf16.msra.mxu0 0
    %99 = vmatprep.subr.bf16.mxu0 0
    %100 = vmatpush1.bf16.msra.mxu0 0
    %101 = vmatprep.subr.bf16.mxu0 0
    %102 = vmatpush1.bf16.msra.mxu0 0
    %103 = vmatprep.subr.bf16.mxu0 0
    %104 = vmatpush1.bf16.msra.mxu0 0
    %105 = vmatprep.subr.bf16.mxu0 0
    %106 = vmatpush1.bf16.msra.mxu0 0
    %107 = vmatprep.mubr.bf16.mxu0 0
    %108 = vmatmul.mubr.bf16.gmra.mrb[0].mxu0 %v73
    %v109 = vpop.f32.mrb[0].mxu0
    %v110 = vadd.f32 %v58, %v109
    %v111 = vpop.f32.mrb[0].mxu0
    %v112 = vpop.f32.mrb[0].mxu0
    %v113 = vadd.f32 %v58, %v112
    %v114 = vpop.f32.mrb[0].mxu0
    %115 = vdwg.mxu0
    %v116 = vmul.f32 %v110, 0.5
    %v117 = vmul.f32 %v113, 0.5
    %v118 = vtanh.pop %v116
    %v119 = vtanh.pop %v117
    %v120 = vadd.f32 %v118, 1.0
    %v121 = vadd.f32 %v119, 1.0
    %v122 = vmul.f32 %v120, 0.5
    %v123 = vmul.f32 %v121, 0.5
    %v124 = vpack.c.bf16 %v123, %v122
    %v125 = vlaneseq
    %v126 = vshrl.u32 %v125, 7
    %v127 = vsub.s32 0, %v126
    %v128 = vrot.slane %v54, %v127
    %v145 = vunpack.c.l.b16 %v37
    %v146 = vunpack.c.l.b16 %v38
    %v147 = vunpack.c.l.b16 %v39
    %v148 = vunpack.c.l.b16 %v40
    %v149 = vunpack.c.l.b16 %v41
    %v150 = vunpack.c.l.b16 %v42
    %v151 = vunpack.c.l.b16 %v43
    %v152 = vunpack.c.l.b16 %v44
    %v153 = vunpack.c.l.b16 %v45
    %v154 = vunpack.c.l.b16 %v46
    %v155 = vunpack.c.l.b16 %v47
    %v156 = vunpack.c.l.b16 %v48
    %v157 = vunpack.c.l.b16 %v49
    %v158 = vunpack.c.l.b16 %v50
    %v159 = vunpack.c.l.b16 %v51
    %v160 = vunpack.c.l.b16 %v52
    %v161 = vpack.c.b16 %v146, %v145
    %v162 = vpack.c.b16 %v148, %v147
    %v163 = vpack.c.b16 %v150, %v149
    %v164 = vpack.c.b16 %v152, %v151
    %v165 = vpack.c.b16 %v154, %v153
    %v166 = vpack.c.b16 %v156, %v155
    %v167 = vpack.c.b16 %v158, %v157
    %v168 = vpack.c.b16 %v160, %v159
    %177 = vmatprep.subr.bf16.mxu0 0
    %178 = vmatpush1.bf16.msra.mxu0 %v161
    %179 = vmatprep.subr.bf16.mxu0 0
    %180 = vmatpush1.bf16.msra.mxu0 %v162
    %181 = vmatprep.subr.bf16.mxu0 0
    %182 = vmatpush1.bf16.msra.mxu0 %v163
    %183 = vmatprep.subr.bf16.mxu0 0
    %184 = vmatpush1.bf16.msra.mxu0 %v164
    %185 = vmatprep.subr.bf16.mxu0 0
    %186 = vmatpush1.bf16.msra.mxu0 %v165
    %187 = vmatprep.subr.bf16.mxu0 0
    %188 = vmatpush1.bf16.msra.mxu0 %v166
    %189 = vmatprep.subr.bf16.mxu0 0
    %190 = vmatpush1.bf16.msra.mxu0 %v167
    %191 = vmatprep.subr.bf16.mxu0 0
    %192 = vmatpush1.bf16.msra.mxu0 %v168
    %193 = vmatprep.subr.bf16.mxu0 0
    %194 = vmatpush1.bf16.msra.mxu0 0
    %195 = vmatprep.subr.bf16.mxu0 0
    %196 = vmatpush1.bf16.msra.mxu0 0
    %197 = vmatprep.subr.bf16.mxu0 0
    %198 = vmatpush1.bf16.msra.mxu0 0
    %199 = vmatprep.subr.bf16.mxu0 0
    %200 = vmatpush1.bf16.msra.mxu0 0
    %201 = vmatprep.subr.bf16.mxu0 0
    %202 = vmatpush1.bf16.msra.mxu0 0
    %203 = vmatprep.subr.bf16.mxu0 0
    %204 = vmatpush1.bf16.msra.mxu0 0
    %205 = vmatprep.subr.bf16.mxu0 0
    %206 = vmatpush1.bf16.msra.mxu0 0
    %207 = vmatprep.subr.bf16.mxu0 0
    %208 = vmatpush1.bf16.msra.mxu0 0
    %209 = vmatprep.mubr.bf16.mxu0 0
    %210 = vmatmul.mubr.bf16.gmra.mrb[0].mxu0 %v124
    %v211 = vpop.f32.mrb[0].mxu0
    %v212 = vadd.f32 %v128, %v211
    %v213 = vpop.f32.mrb[0].mxu0
    %v214 = vpop.f32.mrb[0].mxu0
    %v215 = vadd.f32 %v128, %v214
    %v216 = vpop.f32.mrb[0].mxu0
    %217 = vdwg.mxu0
    %v218 = vmul.f32 %v212, 0.5
    %v219 = vmul.f32 %v215, 0.5
    %v220 = vtanh.pop %v218
    %v221 = vtanh.pop %v219
    %v222 = vadd.f32 %v220, 1.0
    %v223 = vadd.f32 %v221, 1.0
    %v224 = vmul.f32 %v222, 0.5
    %v225 = vmul.f32 %v223, 0.5
    %v226 = vpack.c.bf16 %v225, %v224
    %v228 = vunpack.c.l.b16 %v226
    %v229 = vunpack.c.h.b16 %v226
    %v230 = vpack.c.b16 %v228, %v228
    %v231 = vpack.c.b16 %v229, %v229
    %234 = vst [vmem:[%s3] sm:$0xf] %v230
    %235 = vst [vmem:[%s3 + $0x4] sm:$0xf] %v231
    // Predicated region
    $region18: #{nn_pt_3_forward.1} parent=1 // pred_check
      _
    $region19: #{nn_pt_3_forward.1} parent=1 // pred_check_branch
      %237 = sbr.rel (0) target = $region21
    $region20: #{nn_pt_3_forward.1} parent=1 // pred_region
      _
    $region21: #{nn_pt_3_forward.1} parent=1 // pred_fallthru
      _
    // Predicated region
    $region22: #{nn_pt_3_forward.1} parent=1 // pred_check
      _
    $region23: #{nn_pt_3_forward.1} parent=1 // pred_check_branch
      %239 = sbr.rel (0) target = $region25
    $region24: #{nn_pt_3_forward.1} parent=1 // pred_region
      _
    $region25: #{nn_pt_3_forward.1} parent=1 // pred_fallthru
      _
    %240 = vsyncpa [#allocation3], 1

</llo_original>
